<compile_context>
chip_gen: v6e
topology: v6e:2x2x1
jax: 0.10.0
libtpu: 0.0.40
codegen_flags: <defaults>
</compile_context>

<pallas_src>
import functools
import math

import jax
import jax.numpy as jnp
from jax.experimental import pallas as pl
from jax.experimental.pallas import tpu as pltpu

_LANE = 128
_SUBLANE = 8


def _fca_attention_kernel(x_ref, o_ref, acc_ref, *, scale):
    # x_ref: (Rt, HWt) tile in the input dtype; o_ref: (Rt, 1); acc_ref: (Rt, 1) f32.
    k = pl.program_id(1)

    @pl.when(k == 0)
    def _():
        acc_ref[...] = jnp.zeros_like(acc_ref)

    x = x_ref[...]
    ones = jnp.ones((x.shape[-1], 1), dtype=x.dtype)
    # Row-sum on the MXU (f32 accumulation): avoids an XLU lane-axis reduce per
    # output row and avoids materializing an f32 copy of the whole tile.
    acc_ref[...] += jnp.dot(x, ones, preferred_element_type=jnp.float32)

    @pl.when(k == pl.num_programs(1) - 1)
    def _():
        o_ref[...] = (acc_ref[...] * scale).astype(o_ref.dtype)


def _pick_spatial_tile(HW, itemsize, target_bytes):
    """Largest spatial tile (power of two, multiple of 128 when split) such
    that an 8-row slab fits the byte budget.  HW is a power of two here."""
    hwt = HW
    while hwt > _LANE and _SUBLANE * hwt * itemsize > target_bytes:
        hwt //= 2
    return hwt


def _pick_row_tile(R, row_bytes, target_bytes):
    """Row (sublane) tile: a multiple of 8 dividing R (or R itself) that fits
    the byte budget.  Returns 0 if the caller must pad R to a multiple of 8."""
    budget = max(_SUBLANE, target_bytes // row_bytes)
    if R <= budget:
        # Whole row range fits a single tile; split in two when cleanly
        # possible so both v7x TensorCores get a "parallel" block.
        if R % 16 == 0:
            return R // 2
        return R
    best = 0
    d = _SUBLANE
    while d <= budget:
        if R % d == 0:
            best = d
        d += _SUBLANE
    return best


def fca_attention(x: jax.Array, *, target_tile_bytes=16 * 1024 * 1024) -> jax.Array:
    """Pallas equivalent of FCA_Attention.forward(FWT, x): (B, C, H, W) -> (B, C)."""
    B, C, H, W = x.shape
    assert H == W and (W & (W - 1)) == 0, "expects square, power-of-two spatial dims"
    num_steps = int(math.log2(W)) if W > 1 else 0
    scale = 0.5 ** num_steps

    HW = H * W
    R = B * C
    itemsize = jnp.dtype(x.dtype).itemsize

    # Lane-dense folded spatial axis; (B, C) flattened into one row axis.
    x2 = x.reshape(R, HW)

    # Keep double-buffered tiles comfortably under v7x's 64 MiB physical VMEM.
    eff_target = int(min(target_tile_bytes, 20 * 1024 * 1024))
    HWt = _pick_spatial_tile(HW, itemsize, eff_target)
    Rt = _pick_row_tile(R, HWt * itemsize, eff_target)
    R_pad = R
    if Rt == 0:
        # TODO(synk): rare odd B*C that has no clean multiple-of-8 divisor;
        # zero-pad the rows (one extra HBM copy) to keep (8,128)-compliant blocks.
        R_pad = ((R + _SUBLANE - 1) // _SUBLANE) * _SUBLANE
        x2 = jnp.pad(x2, ((0, R_pad - R), (0, 0)))
        Rt = _pick_row_tile(R_pad, HWt * itemsize, eff_target)

    grid = (R_pad // Rt, HW // HWt)

    tile_in = Rt * HWt * itemsize
    tile_out = Rt * itemsize
    tile_acc = Rt * 4
    vmem_limit = int(min(
        48 * 1024 * 1024,
        max(16 * 1024 * 1024, 2 * tile_in + 2 * tile_out + tile_acc + (4 << 20)),
    ))

    cost = pl.CostEstimate(
        flops=2 * R_pad * HW,
        transcendentals=0,
        bytes_accessed=R_pad * HW * itemsize + R_pad * itemsize,
    )

    kernel = functools.partial(_fca_attention_kernel, scale=scale)

    out2 = pl.pallas_call(
        kernel,
        out_shape=jax.ShapeDtypeStruct((R_pad, 1), x.dtype),
        grid=grid,
        in_specs=[pl.BlockSpec((Rt, HWt), lambda r, k: (r, k))],
        out_specs=pl.BlockSpec((Rt, 1), lambda r, k: (r, 0)),
        scratch_shapes=[pltpu.VMEM((Rt, 1), jnp.float32)],
        compiler_params=pltpu.CompilerParams(
            dimension_semantics=("parallel", "arbitrary"),
            vmem_limit_bytes=vmem_limit,
        ),
        cost_estimate=cost,
    )(x2)

    return out2[:R, 0].reshape(B, C)


def _reference_fca_attention(x: jax.Array) -> jax.Array:
    """Pure-JAX replica of the PyTorch while-loop (iterative Haar LL)."""
    B = x.shape[0]
    while x.shape[-1] > 1:
        x = (x[..., 0::2, 0::2] + x[..., 0::2, 1::2]
             + x[..., 1::2, 0::2] + x[..., 1::2, 1::2]) * 0.5
    return x.reshape(B, -1)


if __name__ == "__main__":
    key = jax.random.PRNGKey(0)
    # Small shapes consistent with the module: B=2, C=4, H=W=16 (power of two).
    x = jax.random.normal(key, (2, 4, 16, 16), dtype=jnp.float32)

    out = fca_attention(x)
    out = jax.block_until_ready(out)

    ref = _reference_fca_attention(x)
    assert out.shape == (2, 4), out.shape
    assert jnp.allclose(out, ref, atol=1e-4, rtol=1e-4), (out, ref)

    print("KERNEL_OK")
</pallas_src>

<mosaic_0001>
module attributes {stable_mosaic.version = 11 : i64} {
  func.func @_fca_attention_kernel(%arg0: i32, %arg1: i32, %arg2: memref<8x256xf32, #tpu.memory_space<vmem>>, %arg3: memref<8x1xf32, #tpu.memory_space<vmem>>, %arg4: memref<8x1xf32, #tpu.memory_space<vmem>>) attributes {dimension_semantics = [#tpu.dimension_semantics<parallel>, #tpu.dimension_semantics<arbitrary>], iteration_bounds = array<i64: 1, 1>, scalar_prefetch = 0 : i64, scratch_operands = 1 : i64, tpu.core_type = #tpu.core_type<tc>, window_params = [{transform_indices = @transform_0, window_bounds = array<i64: 8, 256>}, {transform_indices = @transform_1, window_bounds = array<i64: 8, 1>}]} {
    %c0_i32 = arith.constant 0 : i32
    %0 = arith.cmpi eq, %arg1, %c0_i32 : i32
    %1 = arith.extui %0 : i1 to i32
    %c0_i32_0 = arith.constant 0 : i32
    %2 = arith.cmpi ne, %1, %c0_i32_0 : i32
    scf.if %2 {
      %cst_9 = arith.constant 0.000000e+00 : f32
      %12 = vector.broadcast %cst_9 : f32 to vector<8x1xf32>
      %c0_10 = arith.constant 0 : index
      %c0_11 = arith.constant 0 : index
      %13 = vector.load %arg4[%c0_10, %c0_11] : memref<8x1xf32, #tpu.memory_space<vmem>>, vector<8x1xf32>
      tpu.vector_store %arg4[%c0_10, %c0_11], %12 {strides = array<i32>} : memref<8x1xf32, #tpu.memory_space<vmem>>, vector<8x1xf32>,
    } else {
    }
    %c0 = arith.constant 0 : index
    %c0_1 = arith.constant 0 : index
    %3 = vector.load %arg2[%c0, %c0_1] : memref<8x256xf32, #tpu.memory_space<vmem>>, vector<8x256xf32>
    %cst = arith.constant 1.000000e+00 : f32
    %4 = vector.broadcast %cst : f32 to vector<256x1xf32>
    %c0_2 = arith.constant 0 : index
    %c0_3 = arith.constant 0 : index
    %5 = vector.load %arg4[%c0_2, %c0_3] : memref<8x1xf32, #tpu.memory_space<vmem>>, vector<8x1xf32>
    %cst_4 = arith.constant dense<0.000000e+00> : vector<8x1xf32>
    %6 = tpu.matmul %3, %4, %cst_4 {dimension_numbers = #tpu.dot_dimension_numbers<[1], [0], [0], [1], [0, 0, 1, 1], [], []>} : vector<8x256xf32>, vector<256x1xf32>, vector<8x1xf32> -> vector<8x1xf32>
    %7 = arith.addf %5, %6 : vector<8x1xf32>
    %c0_5 = arith.constant 0 : index
    %c0_6 = arith.constant 0 : index
    %8 = vector.load %arg4[%c0_5, %c0_6] : memref<8x1xf32, #tpu.memory_space<vmem>>, vector<8x1xf32>
    tpu.vector_store %arg4[%c0_5, %c0_6], %7 {strides = array<i32>} : memref<8x1xf32, #tpu.memory_space<vmem>>, vector<8x1xf32>,
    %c0_i32_7 = arith.constant 0 : i32
    %9 = arith.cmpi eq, %arg1, %c0_i32_7 : i32
    %10 = arith.extui %9 : i1 to i32
    %c0_i32_8 = arith.constant 0 : i32
    %11 = arith.cmpi ne, %10, %c0_i32_8 : i32
    scf.if %11 {
      %c0_9 = arith.constant 0 : index
      %c0_10 = arith.constant 0 : index
      %12 = vector.load %arg4[%c0_9, %c0_10] : memref<8x1xf32, #tpu.memory_space<vmem>>, vector<8x1xf32>
      %cst_11 = arith.constant 6.250000e-02 : f32
      %13 = vector.broadcast %cst_11 : f32 to vector<8x1xf32>
      %14 = arith.mulf %12, %13 : vector<8x1xf32>
      %c0_12 = arith.constant 0 : index
      %c0_13 = arith.constant 0 : index
      %15 = vector.load %arg3[%c0_12, %c0_13] : memref<8x1xf32, #tpu.memory_space<vmem>>, vector<8x1xf32>
      tpu.vector_store %arg3[%c0_12, %c0_13], %14 {strides = array<i32>} : memref<8x1xf32, #tpu.memory_space<vmem>>, vector<8x1xf32>,
    } else {
    }
    return
  }
  func.func @transform_0(%arg0: i32, %arg1: i32) -> (i32, i32) {
    %c0_i32 = arith.constant 0 : i32
    return %arg0, %arg1 : i32, i32
  }
  func.func @transform_1(%arg0: i32, %arg1: i32) -> (i32, i32) {
    %c0_i32 = arith.constant 0 : i32
    %c0_i32_0 = arith.constant 0 : i32
    return %arg0, %c0_i32 : i32, i32
  }
}

</mosaic_0001>

<llo_original>
// kernel: tpu_custom_call.1
$region0: #{tpu_custom_call.1}
  #allocation0 [shape = 'u32[]', space=smem, size = 0x4, offset = 0x4, fixed_abs, tag = 'smem constant byte address 0x4 - core index']
  #allocation1 [shape = 'u32[144,128]{1,0:T(1,128)}', space=vmem, size = 0x12000, scoped, tag = 'internal scratch']
  #allocation2 [shape = 'f32[8,1]{1,0:T(8,128)}', space=vmem, size = 0x1000, scoped, tag = 'scratch operand']
  %s0 = inlined_call_operand.hbm [shape: f32[8,256], index: 0, kind: input, shape index: {}]
  %s1 = inlined_call_operand.vmem [shape: f32[8,1], index: 1, kind: output, shape index: {}]
  %s2 = sld [smem:[#allocation0]]
  $region26: #{tpu_custom_call.1} parent=0
    _
  %s4 = ssub.s32 1, %s2
  %s5 = scalar_select 0, %s4, %s2
  $region1: #{tpu_custom_call.1} parent=0
    #allocation3 [shape = 'u8[8192]{0}', space=vmem, size = 0x2000, scoped, tag = 'input window, operand 0, single buffered']
    #allocation4 [shape = 's32[1]{0}', space=sflag, size = 0x4, scoped, tag = 'scoped memory for tpu_custom_call.1']
    %6 = vsyncpa [#allocation4], 0
    // Predicated region
    $region2: #{tpu_custom_call.1} parent=1 // pred_check
      _
    $region3: #{tpu_custom_call.1} parent=1 // pred_check_branch
      %8 = sbr.rel (0) target = $region5
    $region4: #{tpu_custom_call.1} parent=1 // pred_region
      %s10 = ssub.s32 256, 256
      %11 = vsyncadd [#allocation4], %s10
      %s13 = sshll.u32 [#allocation3], 4
      %s14 = int_to_ptr.vmem [resolvable:$true] %s13
      %16 = dma.hbm_to_vmem [thread:$0]  %s0, 256, %s14, [#allocation4]
    $region5: #{tpu_custom_call.1} parent=1 // pred_fallthru
      _
    // Predicated region
    $region6: #{tpu_custom_call.1} parent=1 // pred_check
      _
    $region7: #{tpu_custom_call.1} parent=1 // pred_check_branch
      %18 = sbr.rel (0) target = $region9
    $region8: #{tpu_custom_call.1} parent=1 // pred_region
      %19 = dma.done [#allocation4], 256
    $region9: #{tpu_custom_call.1} parent=1 // pred_fallthru
      _
    %p20 = scmp.eq.s32.totalorder 0, 0
    // Predicated region
    $region10: #{tpu_custom_call.1} parent=1 // pred_check
      %p21 = pneg %p20
    $region11: #{tpu_custom_call.1} parent=1 // pred_check_branch
      %23 = sbr.rel (%p21) target = $region13
    $region12: #{tpu_custom_call.1} parent=1 // pred_region
      %vm24 = vcmask 7168
      %25 = vst.msk [vmem:[#allocation2] sm:$0xff] %vm24, 0.0
    $region13: #{tpu_custom_call.1} parent=1 // pred_fallthru
      _
    %v26 = vld [vmem:[#allocation3] sm:$0xff]
    %v27 = vld [vmem:[#allocation3 + $0x8] sm:$0xff]
    %v28 = vld [vmem:[#allocation2] sm:$0xff]
    %29 = vmatprep.subr.mxu0 0.0
    %30 = vmatpush1.msra.mxu0 1.0
    %31 = vmatprep.subr.mxu0 0.0
    %32 = vmatpush1.msra.mxu0 1.0
    %33 = vmatprep.subr.mxu0 0.0
    %34 = vmatpush1.msra.mxu0 1.0
    %35 = vmatprep.subr.mxu0 0.0
    %36 = vmatpush1.msra.mxu0 1.0
    %37 = vmatprep.subr.mxu0 0.0
    %38 = vmatpush1.msra.mxu0 1.0
    %39 = vmatprep.subr.mxu0 0.0
    %40 = vmatpush1.msra.mxu0 1.0
    %41 = vmatprep.subr.mxu0 0.0
    %42 = vmatpush1.msra.mxu0 1.0
    %43 = vmatprep.subr.mxu0 0.0
    %44 = vmatpush1.msra.mxu0 1.0
    %45 = vmatprep.subr.mxu0 0.0
    %46 = vmatpush1.msra.mxu0 1.0
    %47 = vmatprep.subr.mxu0 0.0
    %48 = vmatpush1.msra.mxu0 1.0
    %49 = vmatprep.subr.mxu0 0.0
    %50 = vmatpush1.msra.mxu0 1.0
    %51 = vmatprep.subr.mxu0 0.0
    %52 = vmatpush1.msra.mxu0 1.0
    %53 = vmatprep.subr.mxu0 0.0
    %54 = vmatpush1.msra.mxu0 1.0
    %55 = vmatprep.subr.mxu0 0.0
    %56 = vmatpush1.msra.mxu0 1.0
    %57 = vmatprep.subr.mxu0 0.0
    %58 = vmatpush1.msra.mxu0 1.0
    %59 = vmatprep.subr.mxu0 0.0
    %60 = vmatpush1.msra.mxu0 1.0
    %61 = vmatprep.subr.mxu0 0.0
    %62 = vmatpush2.msra.mxu0 1.0
    %63 = vmatprep.subr.mxu0 0.0
    %64 = vmatpush2.msra.mxu0 1.0
    %65 = vmatprep.subr.mxu0 0.0
    %66 = vmatpush2.msra.mxu0 1.0
    %67 = vmatprep.subr.mxu0 0.0
    %68 = vmatpush2.msra.mxu0 1.0
    %69 = vmatprep.subr.mxu0 0.0
    %70 = vmatpush2.msra.mxu0 1.0
    %71 = vmatprep.subr.mxu0 0.0
    %72 = vmatpush2.msra.mxu0 1.0
    %73 = vmatprep.subr.mxu0 0.0
    %74 = vmatpush2.msra.mxu0 1.0
    %75 = vmatprep.subr.mxu0 0.0
    %76 = vmatpush2.msra.mxu0 1.0
    %77 = vmatprep.subr.mxu0 0.0
    %78 = vmatpush2.msra.mxu0 1.0
    %79 = vmatprep.subr.mxu0 0.0
    %80 = vmatpush2.msra.mxu0 1.0
    %81 = vmatprep.subr.mxu0 0.0
    %82 = vmatpush2.msra.mxu0 1.0
    %83 = vmatprep.subr.mxu0 0.0
    %84 = vmatpush2.msra.mxu0 1.0
    %85 = vmatprep.subr.mxu0 0.0
    %86 = vmatpush2.msra.mxu0 1.0
    %87 = vmatprep.subr.mxu0 0.0
    %88 = vmatpush2.msra.mxu0 1.0
    %89 = vmatprep.subr.mxu0 0.0
    %90 = vmatpush2.msra.mxu0 1.0
    %91 = vmatprep.subr.mxu0 0.0
    %92 = vmatpush2.msra.mxu0 1.0
    %93 = vmatprep.mubr.f32.mxu0 %v27
    %94 = vmatmul.mubr.f32.gmra.mxu0 %v26
    %v95 = vpop.f32.mrf.mxu0
    %v96 = vadd.f32 0.0, %v95
    %v97 = vpop.f32.mrf.mxu0
    %98 = vdwg.mxu0
    %v99 = vadd.f32 %v28, %v96
    %vm100 = vcmask 7168
    %101 = vst.msk [vmem:[#allocation2] sm:$0xff] %vm100, %v99
    // Predicated region
    $region14: #{tpu_custom_call.1} parent=1 // pred_check
      %p102 = pneg %p20
    $region15: #{tpu_custom_call.1} parent=1 // pred_check_branch
      %104 = sbr.rel (%p102) target = $region17
    $region16: #{tpu_custom_call.1} parent=1 // pred_region
      %v105 = vld [vmem:[#allocation2] sm:$0xff]
      %v106 = vmul.f32 %v105, 0.0625
      %107 = vst.msk [vmem:[%s1] sm:$0xff] %vm100, %v106
    $region17: #{tpu_custom_call.1} parent=1 // pred_fallthru
      _
    // Predicated region
    $region18: #{tpu_custom_call.1} parent=1 // pred_check
      _
    $region19: #{tpu_custom_call.1} parent=1 // pred_check_branch
      %109 = sbr.rel (0) target = $region21
    $region20: #{tpu_custom_call.1} parent=1 // pred_region
      _
    $region21: #{tpu_custom_call.1} parent=1 // pred_fallthru
      _
    // Predicated region
    $region22: #{tpu_custom_call.1} parent=1 // pred_check
      _
    $region23: #{tpu_custom_call.1} parent=1 // pred_check_branch
      %111 = sbr.rel (0) target = $region25
    $region24: #{tpu_custom_call.1} parent=1 // pred_region
      _
    $region25: #{tpu_custom_call.1} parent=1 // pred_fallthru
      _
    %112 = vsyncpa [#allocation4], 1

</llo_original>
